<compile_context>
chip_gen: v7x
topology: tpu7x:2x2x1
jax: 0.10.0
libtpu: 0.0.40
codegen_flags: <defaults>
</compile_context>

<pallas_src>
import itertools
import math

import jax
import jax.numpy as jnp
from jax import lax
from jax.experimental import pallas as pl
from jax.experimental.pallas import tpu as pltpu

# ----- problem constants (mirroring the PyTorch script) -----
action_lists = [[0],
                [0, 2000, 4000, 6000, 8000, 10000, 12000, 14000, 16000, 18000,
                 20000, 22000, 24000, 26000, 28000, 30000],
                [0]]
action_map = [x for x in itertools.product(*action_lists)]
ACTION_DIM = len(action_map)          # 16
L = 2
LT = 2
STATE_DIM = 2 * (1 + L + LT - 1)      # 8
H_ACTOR = 256
H_CRITIC = 128
H_FUSED = H_ACTOR + H_CRITIC          # 384 (fused layer-1 width)

IN_WIDTH = 16                         # merged (state | action | zero-pad) input width
OUT_LANES = 128                       # lane-dense output slab width
NEG = -1e30                           # softmax mask value for padded logit lanes
assert STATE_DIM + 1 <= IN_WIDTH


# ----------------- Pallas kernel -----------------
def _make_kernel(act_dtype):
    """act_dtype: dtype the tanh activations run in (bf16 on v6e/v7x, f32 on v5e)."""

    def actor_critic_kernel(sa_ref,                      # (TB, 16) f32: state | action
                            w1_ref, b1_ref,              # fused layer 1: (8,384) bf16 / (1,384) f32
                            w2a_ref, b2a_ref,            # actor layer 2: (256,256) bf16 / (1,256) f32
                            w3a_ref, b3a_ref,            # actor head (padded): (256,128) bf16 / (1,128) f32
                            w2c_ref, b2c_ref,            # critic layer 2: (128,128) bf16 / (1,128) f32
                            w3c_ref, b3c_ref,            # critic head: (1,128) f32 row / (1,1) f32
                            out_ref):                    # (TB, 128) f32 slab
        sa = sa_ref[...]                                               # (TB, 16) f32
        x = sa[:, :STATE_DIM].astype(jnp.bfloat16)                     # (TB, 8)
        a = sa[:, STATE_DIM:STATE_DIM + 1].astype(jnp.int32)           # (TB, 1), exact (< 2^24)

        # ---- fused layer 1 (actor 256 + critic 128 share the same x) ----
        pre1 = jnp.dot(x, w1_ref[...],
                       preferred_element_type=jnp.float32) + b1_ref[...]
        h_all = jnp.tanh(pre1.astype(act_dtype))                       # (TB, 384)
        h = h_all[:, :H_ACTOR]                                         # (TB, 256)
        hc = h_all[:, H_ACTOR:]                                        # (TB, 128)

        # ---- actor layer 2 + head ----
        pre2 = jnp.dot(h.astype(jnp.bfloat16), w2a_ref[...],
                       preferred_element_type=jnp.float32) + b2a_ref[...]
        h2 = jnp.tanh(pre2.astype(act_dtype))                          # (TB, 256)
        # head padded to 128 lanes; padded weight cols are 0 and padded bias lanes are NEG,
        # so those logits never win the max and exp() underflows to exactly 0.
        logits = jnp.dot(h2.astype(jnp.bfloat16), w3a_ref[...],
                         preferred_element_type=jnp.float32) + b3a_ref[...]   # (TB, 128) f32

        # ---- numerically stable log-softmax, single exp pass ----
        m = jnp.max(logits, axis=-1, keepdims=True)
        z = logits - m
        e = jnp.exp(z)                                                 # padded lanes == 0 exactly
        s = jnp.sum(e, axis=-1, keepdims=True)
        lse = jnp.log(s)
        logp = z - lse                                                 # (TB, 128)
        p = e * pl.reciprocal(s, approx=True)                          # EUP, near-free

        lane = lax.broadcasted_iota(jnp.int32, logits.shape, 1)        # (TB, 128)

        # ---- Categorical.log_prob(action): one-hot gather (action always < 16) ----
        logp_a = jnp.sum(jnp.where(lane == a, logp, 0.0), axis=-1, keepdims=True)

        # ---- Categorical.entropy(): p is exactly 0 on padded lanes, so no mask needed
        #      (keep NEG = -1e30 deep; if it is ever raised, restore a valid-lane mask) ----
        ent = -jnp.sum(p * logp, axis=-1, keepdims=True)

        # ---- critic layer 2 + head (head = elementwise mul + lane reduce, no MXU) ----
        pre2c = jnp.dot(hc.astype(jnp.bfloat16), w2c_ref[...],
                        preferred_element_type=jnp.float32) + b2c_ref[...]
        hc2 = jnp.tanh(pre2c.astype(act_dtype))
        val = jnp.sum(hc2.astype(jnp.float32) * w3c_ref[...],
                      axis=-1, keepdims=True) + b3c_ref[...]

        # ---- pack lane-dense slab: lanes 0..15 log-probs, 16 logp(a), 17 entropy, 18 value ----
        slab = logp                                                    # lanes >= 19 never read
        slab = jnp.where(lane == ACTION_DIM, logp_a, slab)
        slab = jnp.where(lane == ACTION_DIM + 1, ent, slab)
        slab = jnp.where(lane == ACTION_DIM + 2, val, slab)
        out_ref[...] = slab

    return actor_critic_kernel


# ----------------- wrapper -----------------
def _round_up(x, m):
    return (x + m - 1) // m * m


def _default_act_dtype():
    """bf16 tanh on chips with bf16 VPU/EUP (v6e / v7x); f32 elsewhere (v5e, older)."""
    try:
        kind = jax.devices()[0].device_kind.lower()
    except Exception:
        return jnp.float32
    if "v6" in kind or "v7" in kind:
        return jnp.bfloat16
    return jnp.float32


def _choose_tile(B, block_b):
    b8 = _round_up(max(B, 1), 8)
    if b8 <= 8:
        return 8
    # cap tile so large batches give >= 2 grid steps (v7x megacore sharding)
    half = _round_up((b8 + 1) // 2, 8)
    return max(8, min(block_b, half))


def actor_critic_pallas(state, action, params, *, block_b=1024, act_dtype=None):
    """Fused actor+critic forward.

    Returns (log_probs (B, A), action_logprobs (B,), state_value (B,), entropy (B,)).
    """
    if act_dtype is None:
        act_dtype = _default_act_dtype()

    B = state.shape[0]
    TB = _choose_tile(B, block_b)
    B_pad = _round_up(_round_up(max(B, 1), 8), TB)

    # merged input slab: cols 0..7 state, col 8 action (as f32), cols 9..15 zero
    sa = jnp.zeros((B_pad, IN_WIDTH), jnp.float32)
    sa = sa.at[:B, :STATE_DIM].set(state.astype(jnp.float32))
    sa = sa.at[:B, STATE_DIM].set(action.astype(jnp.float32))

    grid = (B_pad // TB,)

    def batch_map(i):
        return (i, 0)

    def resident_map(i):          # weights/biases stay VMEM-resident across the grid
        return (0, 0)

    in_specs = ([pl.BlockSpec((TB, IN_WIDTH), batch_map)]
                + [pl.BlockSpec(p.shape, resident_map) for p in params])

    weight_bytes = sum(int(p.size) * p.dtype.itemsize for p in params)
    cost = pl.CostEstimate(
        flops=2 * B_pad * (STATE_DIM * H_FUSED
                           + H_ACTOR * H_ACTOR
                           + H_ACTOR * OUT_LANES
                           + H_CRITIC * H_CRITIC
                           + H_CRITIC),
        # tanh (384+256+128) + exp(128) + log(1) + reciprocal(1) per row
        transcendentals=B_pad * (H_FUSED + H_ACTOR + H_CRITIC + OUT_LANES + 2),
        bytes_accessed=weight_bytes + B_pad * (IN_WIDTH + OUT_LANES) * 4,
    )

    slab = pl.pallas_call(
        _make_kernel(act_dtype),
        out_shape=jax.ShapeDtypeStruct((B_pad, OUT_LANES), jnp.float32),
        grid=grid,
        in_specs=in_specs,
        out_specs=pl.BlockSpec((TB, OUT_LANES), batch_map),
        compiler_params=pltpu.CompilerParams(
            dimension_semantics=("parallel",),
            vmem_limit_bytes=48 << 20),   # big tiles fit even v5e's small scoped default
        cost_estimate=cost,
    )(sa, *params)

    slab = slab[:B]
    log_probs = slab[:, :ACTION_DIM]
    logp_a = slab[:, ACTION_DIM]
    ent = slab[:, ACTION_DIM + 1]
    val = slab[:, ACTION_DIM + 2]
    return log_probs, logp_a, val, ent


# ----------------- deterministic parameter init (PyTorch-style) -----------------
def _torch_linear(key, fan_in, fan_out):
    # nn.Linear default: U(-1/sqrt(fan_in), 1/sqrt(fan_in)) for W and b
    kw, kb = jax.random.split(key)
    bound = 1.0 / math.sqrt(fan_in)
    w = jax.random.uniform(kw, (fan_in, fan_out), jnp.float32, -bound, bound)
    b = jax.random.uniform(kb, (fan_out,), jnp.float32, -bound, bound)
    return w, b


def pack_params(w1a, b1a, w2a, b2a, w3a, b3a, w1c, b1c, w2c, b2c, w3c, b3c):
    """Pack plain (in,out)-layout f32 Linear params into the kernel's fused/padded
    bf16-weight layout."""
    # fused layer 1: actor cols 0..255, critic cols 256..383
    w1 = jnp.concatenate([w1a, w1c], axis=1).astype(jnp.bfloat16)        # (8, 384)
    b1 = jnp.concatenate([b1a, b1c])[None, :].astype(jnp.float32)        # (1, 384)
    # actor head padded to 128 output lanes; padded bias lanes act as softmax mask
    w3a_p = jnp.zeros((H_ACTOR, OUT_LANES), jnp.float32).at[:, :ACTION_DIM].set(w3a)
    b3a_p = jnp.full((OUT_LANES,), NEG, jnp.float32).at[:ACTION_DIM].set(b3a)[None, :]
    # critic head as a lane row (elementwise-mul + reduce in-kernel)
    w3c_row = w3c.reshape(1, H_CRITIC).astype(jnp.float32)               # (1, 128)
    b3c_s = b3c.reshape(1, 1).astype(jnp.float32)                        # (1, 1)
    return (w1, b1,
            w2a.astype(jnp.bfloat16), b2a[None, :].astype(jnp.float32),
            w3a_p.astype(jnp.bfloat16), b3a_p,
            w2c.astype(jnp.bfloat16), b2c[None, :].astype(jnp.float32),
            w3c_row, b3c_s)


def init_params(key):
    keys = jax.random.split(key, 6)
    w1a, b1a = _torch_linear(keys[0], STATE_DIM, H_ACTOR)
    w2a, b2a = _torch_linear(keys[1], H_ACTOR, H_ACTOR)
    w3a, b3a = _torch_linear(keys[2], H_ACTOR, ACTION_DIM)
    w1c, b1c = _torch_linear(keys[3], STATE_DIM, H_CRITIC)
    w2c, b2c = _torch_linear(keys[4], H_CRITIC, H_CRITIC)
    w3c, b3c = _torch_linear(keys[5], H_CRITIC, 1)
    return pack_params(w1a, b1a, w2a, b2a, w3a, b3a,
                       w1c, b1c, w2c, b2c, w3c, b3c)


# ----------------- ActorCritic API -----------------
def act(state, params, sample_key):
    """ActorCritic.act(): one kernel launch; sample + gather in JAX glue from the
    log-prob matrix returned by the kernel (no log(probs) underflow)."""
    B = state.shape[0]
    dummy = jnp.zeros((B,), jnp.int32)
    log_probs, _, _, _ = actor_critic_pallas(state, dummy, params)
    action = jax.random.categorical(sample_key, log_probs, axis=-1)
    action_logprob = jnp.take_along_axis(log_probs, action[:, None], axis=-1)[:, 0]
    return action, action_logprob
    # TODO(synk): Categorical.sample() itself is done with jax.random.categorical in
    # the wrapper (no in-kernel RNG sampling needed for parity).


def evaluate(state, action, params):
    """ActorCritic.evaluate(): (action_logprobs, squeezed state_value, entropy)."""
    _, logp_a, value, entropy = actor_critic_pallas(state, action, params)
    return logp_a, value, entropy


if __name__ == "__main__":
    key = jax.random.PRNGKey(0)
    k_param, k_state, k_action, k_sample = jax.random.split(key, 4)

    B = 8
    params = init_params(k_param)
    state = jax.random.normal(k_state, (B, STATE_DIM), jnp.float32)
    action = jax.random.randint(k_action, (B,), 0, ACTION_DIM, jnp.int32)

    # evaluate()
    logp_a, value, entropy = evaluate(state, action, params)
    jax.block_until_ready((logp_a, value, entropy))

    # act() — single kernel launch
    sampled_action, sampled_logp = act(state, params, k_sample)
    jax.block_until_ready((sampled_action, sampled_logp))

    # sanity checks
    log_probs, _, _, _ = actor_critic_pallas(state, action, params)
    probs = jnp.exp(log_probs)
    jax.block_until_ready(probs)
    assert probs.shape == (B, ACTION_DIM)
    assert bool(jnp.all(jnp.isfinite(log_probs)))
    assert bool(jnp.all(jnp.isfinite(value)))
    assert bool(jnp.allclose(jnp.sum(probs, axis=-1), 1.0, atol=1e-4))
    assert bool(jnp.all(entropy >= -1e-5))
    assert bool(jnp.all((sampled_action >= 0) & (sampled_action < ACTION_DIM)))

    print("KERNEL_OK")
</pallas_src>

<mosaic_0001>
module attributes {stable_mosaic.version = 11 : i64} {
  func.func @actor_critic_kernel(%arg0: i32, %arg1: memref<8x16xf32, #tpu.memory_space<vmem>>, %arg2: memref<8x384xbf16, #tpu.memory_space<vmem>>, %arg3: memref<1x384xf32, #tpu.memory_space<vmem>>, %arg4: memref<256x256xbf16, #tpu.memory_space<vmem>>, %arg5: memref<1x256xf32, #tpu.memory_space<vmem>>, %arg6: memref<256x128xbf16, #tpu.memory_space<vmem>>, %arg7: memref<1x128xf32, #tpu.memory_space<vmem>>, %arg8: memref<128x128xbf16, #tpu.memory_space<vmem>>, %arg9: memref<1x128xf32, #tpu.memory_space<vmem>>, %arg10: memref<1x128xf32, #tpu.memory_space<vmem>>, %arg11: memref<1x1xf32, #tpu.memory_space<vmem>>, %arg12: memref<8x128xf32, #tpu.memory_space<vmem>>) attributes {dimension_semantics = [#tpu.dimension_semantics<parallel>], iteration_bounds = array<i64: 1>, scalar_prefetch = 0 : i64, scratch_operands = 0 : i64, tpu.core_type = #tpu.core_type<tc>, window_params = [{transform_indices = @transform_0, window_bounds = array<i64: 8, 16>}, {pipeline_mode = #tpu.pipeline_mode<synchronous>, transform_indices = @transform_1, window_bounds = array<i64: 8, 384>}, {pipeline_mode = #tpu.pipeline_mode<synchronous>, transform_indices = @transform_2, window_bounds = array<i64: 1, 384>}, {pipeline_mode = #tpu.pipeline_mode<synchronous>, transform_indices = @transform_3, window_bounds = array<i64: 256, 256>}, {pipeline_mode = #tpu.pipeline_mode<synchronous>, transform_indices = @transform_4, window_bounds = array<i64: 1, 256>}, {pipeline_mode = #tpu.pipeline_mode<synchronous>, transform_indices = @transform_5, window_bounds = array<i64: 256, 128>}, {pipeline_mode = #tpu.pipeline_mode<synchronous>, transform_indices = @transform_6, window_bounds = array<i64: 1, 128>}, {pipeline_mode = #tpu.pipeline_mode<synchronous>, transform_indices = @transform_7, window_bounds = array<i64: 128, 128>}, {pipeline_mode = #tpu.pipeline_mode<synchronous>, transform_indices = @transform_8, window_bounds = array<i64: 1, 128>}, {pipeline_mode = #tpu.pipeline_mode<synchronous>, transform_indices = @transform_9, window_bounds = array<i64: 1, 128>}, {pipeline_mode = #tpu.pipeline_mode<synchronous>, transform_indices = @transform_10, window_bounds = array<i64: 1, 1>}, {transform_indices = @transform_11, window_bounds = array<i64: 8, 128>}]} {
    %c0 = arith.constant 0 : index
    %c0_0 = arith.constant 0 : index
    %0 = vector.load %arg1[%c0, %c0_0] : memref<8x16xf32, #tpu.memory_space<vmem>>, vector<8x16xf32>
    %1 = vector.extract_strided_slice %0 {offsets = [0, 0], sizes = [8, 8], strides = [1, 1]} : vector<8x16xf32> to vector<8x8xf32>
    %2 = arith.truncf %1 : vector<8x8xf32> to vector<8x8xbf16>
    %3 = vector.extract_strided_slice %0 {offsets = [0, 8], sizes = [8, 1], strides = [1, 1]} : vector<8x16xf32> to vector<8x1xf32>
    %4 = arith.fptosi %3 : vector<8x1xf32> to vector<8x1xi32>
    %c0_1 = arith.constant 0 : index
    %c0_2 = arith.constant 0 : index
    %5 = vector.load %arg2[%c0_1, %c0_2] : memref<8x384xbf16, #tpu.memory_space<vmem>>, vector<8x384xbf16>
    %cst = arith.constant dense<0.000000e+00> : vector<8x384xf32>
    %6 = tpu.matmul %2, %5, %cst {dimension_numbers = #tpu.dot_dimension_numbers<[1], [0], [0], [1], [0, 0, 1, 1], [], []>} : vector<8x8xbf16>, vector<8x384xbf16>, vector<8x384xf32> -> vector<8x384xf32>
    %c0_3 = arith.constant 0 : index
    %c0_4 = arith.constant 0 : index
    %7 = vector.load %arg3[%c0_3, %c0_4] : memref<1x384xf32, #tpu.memory_space<vmem>>, vector<1x384xf32>
    %8 = vector.broadcast %7 : vector<1x384xf32> to vector<8x384xf32>
    %9 = arith.addf %6, %8 : vector<8x384xf32>
    %10 = math.tanh %9 : vector<8x384xf32>
    %11 = vector.extract_strided_slice %10 {offsets = [0, 0], sizes = [8, 256], strides = [1, 1]} : vector<8x384xf32> to vector<8x256xf32>
    %12 = vector.extract_strided_slice %10 {offsets = [0, 256], sizes = [8, 128], strides = [1, 1]} : vector<8x384xf32> to vector<8x128xf32>
    %13 = arith.truncf %11 : vector<8x256xf32> to vector<8x256xbf16>
    %c0_5 = arith.constant 0 : index
    %c0_6 = arith.constant 0 : index
    %14 = vector.load %arg4[%c0_5, %c0_6] : memref<256x256xbf16, #tpu.memory_space<vmem>>, vector<256x256xbf16>
    %cst_7 = arith.constant dense<0.000000e+00> : vector<8x256xf32>
    %15 = tpu.matmul %13, %14, %cst_7 {dimension_numbers = #tpu.dot_dimension_numbers<[1], [0], [0], [1], [0, 0, 1, 1], [], []>} : vector<8x256xbf16>, vector<256x256xbf16>, vector<8x256xf32> -> vector<8x256xf32>
    %c0_8 = arith.constant 0 : index
    %c0_9 = arith.constant 0 : index
    %16 = vector.load %arg5[%c0_8, %c0_9] : memref<1x256xf32, #tpu.memory_space<vmem>>, vector<1x256xf32>
    %17 = vector.broadcast %16 : vector<1x256xf32> to vector<8x256xf32>
    %18 = arith.addf %15, %17 : vector<8x256xf32>
    %19 = math.tanh %18 : vector<8x256xf32>
    %20 = arith.truncf %19 : vector<8x256xf32> to vector<8x256xbf16>
    %c0_10 = arith.constant 0 : index
    %c0_11 = arith.constant 0 : index
    %21 = vector.load %arg6[%c0_10, %c0_11] : memref<256x128xbf16, #tpu.memory_space<vmem>>, vector<256x128xbf16>
    %cst_12 = arith.constant dense<0.000000e+00> : vector<8x128xf32>
    %22 = tpu.matmul %20, %21, %cst_12 {dimension_numbers = #tpu.dot_dimension_numbers<[1], [0], [0], [1], [0, 0, 1, 1], [], []>} : vector<8x256xbf16>, vector<256x128xbf16>, vector<8x128xf32> -> vector<8x128xf32>
    %c0_13 = arith.constant 0 : index
    %c0_14 = arith.constant 0 : index
    %23 = vector.load %arg7[%c0_13, %c0_14] : memref<1x128xf32, #tpu.memory_space<vmem>>, vector<1x128xf32>
    %24 = vector.broadcast %23 : vector<1x128xf32> to vector<8x128xf32>
    %25 = arith.addf %22, %24 : vector<8x128xf32>
    %cst_15 = arith.constant dense<0xFF800000> : vector<8xf32>
    %26 = vector.multi_reduction <maximumf>, %25, %cst_15 [1] : vector<8x128xf32> to vector<8xf32>
    %27 = vector.shape_cast %26 : vector<8xf32> to vector<8x1xf32>
    %28 = vector.broadcast %27 : vector<8x1xf32> to vector<8x128xf32>
    %29 = arith.subf %25, %28 : vector<8x128xf32>
    %30 = math.exp %29 : vector<8x128xf32>
    %cst_16 = arith.constant dense<0.000000e+00> : vector<8xf32>
    %31 = vector.multi_reduction <add>, %30, %cst_16 [1] : vector<8x128xf32> to vector<8xf32>
    %32 = vector.shape_cast %31 : vector<8xf32> to vector<8x1xf32>
    %33 = math.log %32 : vector<8x1xf32>
    %34 = vector.broadcast %33 : vector<8x1xf32> to vector<8x128xf32>
    %35 = arith.subf %29, %34 : vector<8x128xf32>
    %36 = tpu.reciprocal %32 {approx = true} : vector<8x1xf32> -> vector<8x1xf32>
    %37 = vector.broadcast %36 : vector<8x1xf32> to vector<8x128xf32>
    %38 = arith.mulf %30, %37 : vector<8x128xf32>
    %39 = tpu.iota {dimensions = array<i32: 1>} : vector<8x128xi32>
    %40 = vector.broadcast %4 : vector<8x1xi32> to vector<8x128xi32>
    %41 = arith.cmpi eq, %39, %40 : vector<8x128xi32>
    %cst_17 = arith.constant 0.000000e+00 : f32
    %42 = vector.broadcast %cst_17 : f32 to vector<8x128xf32>
    %43 = arith.select %41, %35, %42 : vector<8x128xi1>, vector<8x128xf32>
    %cst_18 = arith.constant dense<0.000000e+00> : vector<8xf32>
    %44 = vector.multi_reduction <add>, %43, %cst_18 [1] : vector<8x128xf32> to vector<8xf32>
    %45 = vector.shape_cast %44 : vector<8xf32> to vector<8x1xf32>
    %46 = arith.mulf %38, %35 : vector<8x128xf32>
    %cst_19 = arith.constant dense<0.000000e+00> : vector<8xf32>
    %47 = vector.multi_reduction <add>, %46, %cst_19 [1] : vector<8x128xf32> to vector<8xf32>
    %48 = vector.shape_cast %47 : vector<8xf32> to vector<8x1xf32>
    %cst_20 = arith.constant 0.000000e+00 : f32
    %49 = vector.broadcast %cst_20 : f32 to vector<8x1xf32>
    %50 = arith.subf %49, %48 : vector<8x1xf32>
    %51 = arith.truncf %12 : vector<8x128xf32> to vector<8x128xbf16>
    %c0_21 = arith.constant 0 : index
    %c0_22 = arith.constant 0 : index
    %52 = vector.load %arg8[%c0_21, %c0_22] : memref<128x128xbf16, #tpu.memory_space<vmem>>, vector<128x128xbf16>
    %cst_23 = arith.constant dense<0.000000e+00> : vector<8x128xf32>
    %53 = tpu.matmul %51, %52, %cst_23 {dimension_numbers = #tpu.dot_dimension_numbers<[1], [0], [0], [1], [0, 0, 1, 1], [], []>} : vector<8x128xbf16>, vector<128x128xbf16>, vector<8x128xf32> -> vector<8x128xf32>
    %c0_24 = arith.constant 0 : index
    %c0_25 = arith.constant 0 : index
    %54 = vector.load %arg9[%c0_24, %c0_25] : memref<1x128xf32, #tpu.memory_space<vmem>>, vector<1x128xf32>
    %55 = vector.broadcast %54 : vector<1x128xf32> to vector<8x128xf32>
    %56 = arith.addf %53, %55 : vector<8x128xf32>
    %57 = math.tanh %56 : vector<8x128xf32>
    %c0_26 = arith.constant 0 : index
    %c0_27 = arith.constant 0 : index
    %58 = vector.load %arg10[%c0_26, %c0_27] : memref<1x128xf32, #tpu.memory_space<vmem>>, vector<1x128xf32>
    %59 = vector.broadcast %58 : vector<1x128xf32> to vector<8x128xf32>
    %60 = arith.mulf %57, %59 : vector<8x128xf32>
    %cst_28 = arith.constant dense<0.000000e+00> : vector<8xf32>
    %61 = vector.multi_reduction <add>, %60, %cst_28 [1] : vector<8x128xf32> to vector<8xf32>
    %62 = vector.shape_cast %61 : vector<8xf32> to vector<8x1xf32>
    %c0_29 = arith.constant 0 : index
    %c0_30 = arith.constant 0 : index
    %63 = vector.load %arg11[%c0_29, %c0_30] : memref<1x1xf32, #tpu.memory_space<vmem>>, vector<1x1xf32>
    %64 = vector.broadcast %63 : vector<1x1xf32> to vector<8x1xf32>
    %65 = arith.addf %62, %64 : vector<8x1xf32>
    %c16_i32 = arith.constant 16 : i32
    %66 = vector.broadcast %c16_i32 : i32 to vector<8x128xi32>
    %67 = arith.cmpi eq, %39, %66 : vector<8x128xi32>
    %68 = vector.shape_cast %45 : vector<8x1xf32> to vector<8x1xf32>
    %69 = vector.broadcast %68 : vector<8x1xf32> to vector<8x128xf32>
    %70 = arith.select %67, %69, %35 : vector<8x128xi1>, vector<8x128xf32>
    %c17_i32 = arith.constant 17 : i32
    %71 = vector.broadcast %c17_i32 : i32 to vector<8x128xi32>
    %72 = arith.cmpi eq, %39, %71 : vector<8x128xi32>
    %73 = vector.shape_cast %50 : vector<8x1xf32> to vector<8x1xf32>
    %74 = vector.broadcast %73 : vector<8x1xf32> to vector<8x128xf32>
    %75 = arith.select %72, %74, %70 : vector<8x128xi1>, vector<8x128xf32>
    %c18_i32 = arith.constant 18 : i32
    %76 = vector.broadcast %c18_i32 : i32 to vector<8x128xi32>
    %77 = arith.cmpi eq, %39, %76 : vector<8x128xi32>
    %78 = vector.shape_cast %65 : vector<8x1xf32> to vector<8x1xf32>
    %79 = vector.broadcast %78 : vector<8x1xf32> to vector<8x128xf32>
    %80 = arith.select %77, %79, %75 : vector<8x128xi1>, vector<8x128xf32>
    %c0_31 = arith.constant 0 : index
    %c0_32 = arith.constant 0 : index
    %81 = vector.load %arg12[%c0_31, %c0_32] : memref<8x128xf32, #tpu.memory_space<vmem>>, vector<8x128xf32>
    tpu.vector_store %arg12[%c0_31, %c0_32], %80 {strides = array<i32>} : memref<8x128xf32, #tpu.memory_space<vmem>>, vector<8x128xf32>,
    return
  }
  func.func @transform_0(%arg0: i32) -> (i32, i32) {
    %c0_i32 = arith.constant 0 : i32
    %c0_i32_0 = arith.constant 0 : i32
    return %arg0, %c0_i32 : i32, i32
  }
  func.func @transform_1(%arg0: i32) -> (i32, i32) {
    %c0_i32 = arith.constant 0 : i32
    %c0_i32_0 = arith.constant 0 : i32
    %c0_i32_1 = arith.constant 0 : i32
    return %c0_i32, %c0_i32_0 : i32, i32
  }
  func.func @transform_2(%arg0: i32) -> (i32, i32) {
    %c0_i32 = arith.constant 0 : i32
    %c0_i32_0 = arith.constant 0 : i32
    %c0_i32_1 = arith.constant 0 : i32
    return %c0_i32, %c0_i32_0 : i32, i32
  }
  func.func @transform_3(%arg0: i32) -> (i32, i32) {
    %c0_i32 = arith.constant 0 : i32
    %c0_i32_0 = arith.constant 0 : i32
    %c0_i32_1 = arith.constant 0 : i32
    return %c0_i32, %c0_i32_0 : i32, i32
  }
  func.func @transform_4(%arg0: i32) -> (i32, i32) {
    %c0_i32 = arith.constant 0 : i32
    %c0_i32_0 = arith.constant 0 : i32
    %c0_i32_1 = arith.constant 0 : i32
    return %c0_i32, %c0_i32_0 : i32, i32
  }
  func.func @transform_5(%arg0: i32) -> (i32, i32) {
    %c0_i32 = arith.constant 0 : i32
    %c0_i32_0 = arith.constant 0 : i32
    %c0_i32_1 = arith.constant 0 : i32
    return %c0_i32, %c0_i32_0 : i32, i32
  }
  func.func @transform_6(%arg0: i32) -> (i32, i32) {
    %c0_i32 = arith.constant 0 : i32
    %c0_i32_0 = arith.constant 0 : i32
    %c0_i32_1 = arith.constant 0 : i32
    return %c0_i32, %c0_i32_0 : i32, i32
  }
  func.func @transform_7(%arg0: i32) -> (i32, i32) {
    %c0_i32 = arith.constant 0 : i32
    %c0_i32_0 = arith.constant 0 : i32
    %c0_i32_1 = arith.constant 0 : i32
    return %c0_i32, %c0_i32_0 : i32, i32
  }
  func.func @transform_8(%arg0: i32) -> (i32, i32) {
    %c0_i32 = arith.constant 0 : i32
    %c0_i32_0 = arith.constant 0 : i32
    %c0_i32_1 = arith.constant 0 : i32
    return %c0_i32, %c0_i32_0 : i32, i32
  }
  func.func @transform_9(%arg0: i32) -> (i32, i32) {
    %c0_i32 = arith.constant 0 : i32
    %c0_i32_0 = arith.constant 0 : i32
    %c0_i32_1 = arith.constant 0 : i32
    return %c0_i32, %c0_i32_0 : i32, i32
  }
  func.func @transform_10(%arg0: i32) -> (i32, i32) {
    %c0_i32 = arith.constant 0 : i32
    %c0_i32_0 = arith.constant 0 : i32
    %c0_i32_1 = arith.constant 0 : i32
    return %c0_i32, %c0_i32_0 : i32, i32
  }
  func.func @transform_11(%arg0: i32) -> (i32, i32) {
    %c0_i32 = arith.constant 0 : i32
    %c0_i32_0 = arith.constant 0 : i32
    return %arg0, %c0_i32 : i32, i32
  }
}

</mosaic_0001>

<llo_original>
// kernel: tpu_custom_call.1
$region0: #{tpu_custom_call.1}
  #allocation0 [shape = 'u32[]', space=smem, size = 0x4, offset = 0x4, fixed_abs, tag = 'smem constant byte address 0x4 - core index']
  #allocation1 [shape = 'u32[144,128]{1,0:T(1,128)}', space=vmem, size = 0x12000, scoped, tag = 'internal scratch']
  #allocation2 [shape = 'f32[1,1]{1,0:T(1,128)S(1)}', space=vmem, size = 0x200, scoped, tag = 'scoped memory for tpu_custom_call.1']
  %s0 = inlined_call_operand.hbm [shape: f32[8,16], index: 0, kind: input, shape index: {}]
  %s1 = inlined_call_operand.hbm [shape: bf16[8,384], index: 1, kind: input, shape index: {}]
  %s2 = inlined_call_operand.vmem [shape: f32[1,384], index: 2, kind: input, shape index: {}]
  %s3 = inlined_call_operand.hbm [shape: bf16[256,256], index: 3, kind: input, shape index: {}]
  %s4 = inlined_call_operand.vmem [shape: f32[1,256], index: 4, kind: input, shape index: {}]
  %s5 = inlined_call_operand.hbm [shape: bf16[256,128], index: 5, kind: input, shape index: {}]
  %s6 = inlined_call_operand.vmem [shape: f32[1,128], index: 6, kind: input, shape index: {}]
  %s7 = inlined_call_operand.hbm [shape: bf16[128,128], index: 7, kind: input, shape index: {}]
  %s8 = inlined_call_operand.vmem [shape: f32[1,128], index: 8, kind: input, shape index: {}]
  %s9 = inlined_call_operand.vmem [shape: f32[1,128], index: 9, kind: input, shape index: {}]
  %s10 = inlined_call_operand.<no memory space> [shape: f32[1,1], index: 10, kind: input, shape index: {}]
  %s11 = inlined_call_operand.hbm [shape: f32[8,128], index: 11, kind: output, shape index: {}]
  %s12 = sld [smem:[#allocation0]]
  $region74: #{tpu_custom_call.1} parent=0
    _
  %s14 = ssub.s32 1, %s12
  %s15 = scalar_select 0, %s14, %s12
  %v16 = vstv %s10
  %17 = vst [vmem:[#allocation2] sm:$0x1] %v16
  $region1: #{tpu_custom_call.1} parent=0
    #allocation3 [shape = 'u8[4096]{0}', space=vmem, size = 0x1000, scoped, tag = 'input window, operand 0, single buffered']
    #allocation4 [shape = 's32[1]{0}', space=sflag, size = 0x4, scoped, tag = 'scoped memory for tpu_custom_call.1']
    #allocation5 [shape = 's32[1]{0}', space=sflag, size = 0x4, scoped, tag = 'scoped memory for tpu_custom_call.1']
    #allocation6 [shape = 'u8[6144]{0}', space=vmem, size = 0x1800, scoped, tag = 'input window, operand 1, single buffered']
    #allocation7 [shape = 's32[1]{0}', space=sflag, size = 0x4, scoped, tag = 'scoped memory for tpu_custom_call.1']
    #allocation8 [shape = 'u8[131072]{0}', space=vmem, size = 0x20000, scoped, tag = 'input window, operand 3, single buffered']
    #allocation9 [shape = 'u8[65536]{0}', space=vmem, size = 0x10000, scoped, tag = 'input window, operand 5, single buffered']
    #allocation10 [shape = 's32[1]{0}', space=sflag, size = 0x4, scoped, tag = 'scoped memory for tpu_custom_call.1']
    #allocation11 [shape = 'u8[32768]{0}', space=vmem, size = 0x8000, scoped, tag = 'input window, operand 7, single buffered']
    #allocation12 [shape = 'u8[4096]{0}', space=vmem, size = 0x1000, scoped, tag = 'output window, operand 0, single buffered']
    %18 = vsyncpa [#allocation4], 0
    %19 = vsyncpa [#allocation7], 0
    %20 = vsyncpa [#allocation10], 0
    %21 = vsyncpa [#allocation5], 0
    // Predicated region
    $region2: #{tpu_custom_call.1} parent=1 // pred_check
      _
    $region3: #{tpu_custom_call.1} parent=1 // pred_check_branch
      %23 = sbr.rel (0) target = $region5
    $region4: #{tpu_custom_call.1} parent=1 // pred_region
      %s25 = ssub.s32 128, 128
      %26 = vsyncadd [#allocation4], %s25
      %s28 = sshll.u32 [#allocation3], 4
      %s29 = int_to_ptr.vmem [resolvable:$true] %s28
      %31 = dma.hbm_to_vmem [thread:$0]  %s0, 128, %s29, [#allocation4]
    $region5: #{tpu_custom_call.1} parent=1 // pred_fallthru
      _
    // Predicated region
    $region6: #{tpu_custom_call.1} parent=1 // pred_check
      _
    $region7: #{tpu_custom_call.1} parent=1 // pred_check_branch
      %33 = sbr.rel (0) target = $region9
    $region8: #{tpu_custom_call.1} parent=1 // pred_region
      %s35 = ssub.s32 192, 192
      %36 = vsyncadd [#allocation7], %s35
      %s38 = sshll.u32 [#allocation6], 4
      %s39 = int_to_ptr.vmem [resolvable:$true] %s38
      %41 = dma.hbm_to_vmem [thread:$0]  %s1, 192, %s39, [#allocation7]
    $region9: #{tpu_custom_call.1} parent=1 // pred_fallthru
      _
    // Predicated region
    $region10: #{tpu_custom_call.1} parent=1 // pred_check
      _
    $region11: #{tpu_custom_call.1} parent=1 // pred_check_branch
      %43 = sbr.rel (0) target = $region13
    $region12: #{tpu_custom_call.1} parent=1 // pred_region
      _
    $region13: #{tpu_custom_call.1} parent=1 // pred_fallthru
      _
    // Predicated region
    $region14: #{tpu_custom_call.1} parent=1 // pred_check
      _
    $region15: #{tpu_custom_call.1} parent=1 // pred_check_branch
      %45 = sbr.rel (0) target = $region17
    $region16: #{tpu_custom_call.1} parent=1 // pred_region
      %s47 = ssub.s32 4096, 4096
      %48 = vsyncadd [#allocation7], %s47
      %s49 = sshll.u32 [#allocation8], 4
      %s50 = int_to_ptr.vmem [resolvable:$true] %s49
      %55 = dma.hbm_to_vmem [thread:$0]  %s3, 4096, %s50, [#allocation7], 128, 128, 8
    $region17: #{tpu_custom_call.1} parent=1 // pred_fallthru
      _
    // Predicated region
    $region18: #{tpu_custom_call.1} parent=1 // pred_check
      _
    $region19: #{tpu_custom_call.1} parent=1 // pred_check_branch
      %57 = sbr.rel (0) target = $region21
    $region20: #{tpu_custom_call.1} parent=1 // pred_region
      _
    $region21: #{tpu_custom_call.1} parent=1 // pred_fallthru
      _
    // Predicated region
    $region22: #{tpu_custom_call.1} parent=1 // pred_check
      _
    $region23: #{tpu_custom_call.1} parent=1 // pred_check_branch
      %59 = sbr.rel (0) target = $region25
    $region24: #{tpu_custom_call.1} parent=1 // pred_region
      %s61 = ssub.s32 2048, 2048
      %62 = vsyncadd [#allocation10], %s61
      %s63 = sshll.u32 [#allocation9], 4
      %s64 = int_to_ptr.vmem [resolvable:$true] %s63
      %69 = dma.hbm_to_vmem [thread:$0]  %s5, 2048, %s64, [#allocation10], 64, 64, 4
    $region25: #{tpu_custom_call.1} parent=1 // pred_fallthru
      _
    // Predicated region
    $region26: #{tpu_custom_call.1} parent=1 // pred_check
      _
    $region27: #{tpu_custom_call.1} parent=1 // pred_check_branch
      %71 = sbr.rel (0) target = $region29
    $region28: #{tpu_custom_call.1} parent=1 // pred_region
      _
    $region29: #{tpu_custom_call.1} parent=1 // pred_fallthru
      _
    // Predicated region
    $region30: #{tpu_custom_call.1} parent=1 // pred_check
      _
    $region31: #{tpu_custom_call.1} parent=1 // pred_check_branch
      %73 = sbr.rel (0) target = $region33
    $region32: #{tpu_custom_call.1} parent=1 // pred_region
      %s75 = ssub.s32 1024, 1024
      %76 = vsyncadd [#allocation10], %s75
      %s77 = sshll.u32 [#allocation11], 4
      %s78 = int_to_ptr.vmem [resolvable:$true] %s77
      %83 = dma.hbm_to_vmem [thread:$0]  %s7, 1024, %s78, [#allocation10], 64, 64, 4
    $region33: #{tpu_custom_call.1} parent=1 // pred_fallthru
      _
    // Predicated region
    $region34: #{tpu_custom_call.1} parent=1 // pred_check
      _
    $region35: #{tpu_custom_call.1} parent=1 // pred_check_branch
      %85 = sbr.rel (0) target = $region37
    $region36: #{tpu_custom_call.1} parent=1 // pred_region
      _
    $region37: #{tpu_custom_call.1} parent=1 // pred_fallthru
      _
    // Predicated region
    $region38: #{tpu_custom_call.1} parent=1 // pred_check
      _
    $region39: #{tpu_custom_call.1} parent=1 // pred_check_branch
      %87 = sbr.rel (0) target = $region41
    $region40: #{tpu_custom_call.1} parent=1 // pred_region
      _
    $region41: #{tpu_custom_call.1} parent=1 // pred_fallthru
      _
    // Predicated region
    $region42: #{tpu_custom_call.1} parent=1 // pred_check
      _
    $region43: #{tpu_custom_call.1} parent=1 // pred_check_branch
      %89 = sbr.rel (0) target = $region45
    $region44: #{tpu_custom_call.1} parent=1 // pred_region
      _
    $region45: #{tpu_custom_call.1} parent=1 // pred_fallthru
      _
    // Predicated region
    $region46: #{tpu_custom_call.1} parent=1 // pred_check
      _
    $region47: #{tpu_custom_call.1} parent=1 // pred_check_branch
      %91 = sbr.rel (0) target = $region49
    $region48: #{tpu_custom_call.1} parent=1 // pred_region
      %92 = dma.done [#allocation4], 128
    $region49: #{tpu_custom_call.1} parent=1 // pred_fallthru
      _
    // Predicated region
    $region50: #{tpu_custom_call.1} parent=1 // pred_check
      _
    $region51: #{tpu_custom_call.1} parent=1 // pred_check_branch
      %94 = sbr.rel (0) target = $region53
    $region52: #{tpu_custom_call.1} parent=1 // pred_region
      %95 = dma.done [#allocation7], 192
    $region53: #{tpu_custom_call.1} parent=1 // pred_fallthru
      _
    // Predicated region
    $region54: #{tpu_custom_call.1} parent=1 // pred_check
      _
    $region55: #{tpu_custom_call.1} parent=1 // pred_check_branch
      %97 = sbr.rel (0) target = $region57
    $region56: #{tpu_custom_call.1} parent=1 // pred_region
      %98 = dma.done [#allocation7], 4096
    $region57: #{tpu_custom_call.1} parent=1 // pred_fallthru
      _
    // Predicated region
    $region58: #{tpu_custom_call.1} parent=1 // pred_check
      _
    $region59: #{tpu_custom_call.1} parent=1 // pred_check_branch
      %100 = sbr.rel (0) target = $region61
    $region60: #{tpu_custom_call.1} parent=1 // pred_region
      %101 = dma.done [#allocation10], 2048
    $region61: #{tpu_custom_call.1} parent=1 // pred_fallthru
      _
    // Predicated region
    $region62: #{tpu_custom_call.1} parent=1 // pred_check
      _
    $region63: #{tpu_custom_call.1} parent=1 // pred_check_branch
      %103 = sbr.rel (0) target = $region65
    $region64: #{tpu_custom_call.1} parent=1 // pred_region
      %104 = dma.done [#allocation10], 1024
    $region65: #{tpu_custom_call.1} parent=1 // pred_fallthru
      _
    %v106 = vld [vmem:[#allocation3] sm:$0xff]
    %v107 = vpack.c.bf16 %v106, %v106
    %v108 = vcvt.f32.s32.to.zero.pseudo %v106
    %v109 = vld [vmem:[#allocation6] sm:$0xff]
    %v110 = vld [vmem:[#allocation6 + $0x8] sm:$0xf]
    %v111 = vld [vmem:[%s2] sm:$0x7]
    %v113 = vlaneseq
    %v114 = vshrl.u32 %v113, 7
    %v115 = vsub.s32 0, %v114
    %v116 = vrot.slane %v111, %v115
    %v117 = vlaneseq
    %v118 = vshrl.u32 %v117, 7
    %v119 = vsub.s32 1, %v118
    %v120 = vrot.slane %v111, %v119
    %v121 = vlaneseq
    %v122 = vshrl.u32 %v121, 7
    %v123 = vsub.s32 2, %v122
    %v124 = vrot.slane %v111, %v123
    %v130 = vunpack.c.l.b16 %v109
    %v131 = vunpack.c.h.b16 %v109
    %v132 = vunpack.c.l.b16 %v110
    %v133 = vpack.c.b16 %v130, %v130
    %v134 = vpack.c.b16 %v131, %v131
    %v135 = vpack.c.b16 %v132, %v132
    %vm136 = vcmask 64512
    %v138 = vsel %vm136, %v107, 0
    %vm140 = vcmask 1043456
    %v142 = vsel %vm140, %v133, 0
    %v145 = vsel %vm140, %v134, 0
    %v148 = vsel %vm140, %v135, 0
    %150 = vmatprep.subr.bf16.mxu0 %v145
    %151 = vmatpush1.bf16.msra.mxu0 %v142
    %152 = vmatprep.subr.bf16.mxu0 0
    %153 = vmatpush1.bf16.msra.mxu0 0
    %154 = vmatprep.subr.bf16.mxu0 0
    %155 = vmatpush1.bf16.msra.mxu0 0
    %156 = vmatprep.subr.bf16.mxu0 0
    %157 = vmatpush1.bf16.msra.mxu0 0
    %158 = vmatprep.subr.bf16.mxu0 0
    %159 = vmatpush1.bf16.msra.mxu0 0
    %160 = vmatprep.subr.bf16.mxu0 0
    %161 = vmatpush1.bf16.msra.mxu0 0
    %162 = vmatprep.subr.bf16.mxu0 0
    %163 = vmatpush1.bf16.msra.mxu0 0
    %164 = vmatprep.subr.bf16.mxu0 0
    %165 = vmatpush1.bf16.msra.mxu0 0
    %166 = vmatprep.subr.bf16.mxu0 0
    %167 = vmatpush1.bf16.msra.mxu0 0
    %168 = vmatprep.subr.bf16.mxu0 0
    %169 = vmatpush1.bf16.msra.mxu0 0
    %170 = vmatprep.subr.bf16.mxu0 0
    %171 = vmatpush1.bf16.msra.mxu0 0
    %172 = vmatprep.subr.bf16.mxu0 0
    %173 = vmatpush1.bf16.msra.mxu0 0
    %174 = vmatprep.subr.bf16.mxu0 0
    %175 = vmatpush1.bf16.msra.mxu0 0
    %176 = vmatprep.subr.bf16.mxu0 0
    %177 = vmatpush1.bf16.msra.mxu0 0
    %178 = vmatprep.subr.bf16.mxu0 0
    %179 = vmatpush1.bf16.msra.mxu0 0
    %180 = vmatprep.subr.bf16.mxu0 0
    %181 = vmatpush1.bf16.msra.mxu0 0
    %182 = vmatprep.mubr.bf16.mxu0 0
    %183 = vmatmul.mubr.bf16.gmra.mrb[0].mxu0 %v138
    %v184 = vpop.f32.mrb[0].mxu0
    %v185 = vadd.f32 %v116, %v184
    %v186 = vpop.f32.mrb[0].mxu0
    %v187 = vadd.f32 %v120, %v186
    %v188 = vpop.f32.mrb[0].mxu0
    %v189 = vpop.f32.mrb[0].mxu0
    %190 = vdwg.mxu0
    %191 = vmatprep.subr.bf16.mxu0 0
    %192 = vmatpush1.bf16.msra.mxu0 %v148
    %193 = vmatprep.subr.bf16.mxu0 0
    %194 = vmatpush1.bf16.msra.mxu0 0
    %195 = vmatprep.subr.bf16.mxu0 0
    %196 = vmatpush1.bf16.msra.mxu0 0
    %197 = vmatprep.subr.bf16.mxu0 0
    %198 = vmatpush1.bf16.msra.mxu0 0
    %199 = vmatprep.subr.bf16.mxu0 0
    %200 = vmatpush1.bf16.msra.mxu0 0
    %201 = vmatprep.subr.bf16.mxu0 0
    %202 = vmatpush1.bf16.msra.mxu0 0
    %203 = vmatprep.subr.bf16.mxu0 0
    %204 = vmatpush1.bf16.msra.mxu0 0
    %205 = vmatprep.subr.bf16.mxu0 0
    %206 = vmatpush1.bf16.msra.mxu0 0
    %207 = vmatprep.subr.bf16.mxu0 0
    %208 = vmatpush1.bf16.msra.mxu0 0
    %209 = vmatprep.subr.bf16.mxu0 0
    %210 = vmatpush1.bf16.msra.mxu0 0
    %211 = vmatprep.subr.bf16.mxu0 0
    %212 = vmatpush1.bf16.msra.mxu0 0
    %213 = vmatprep.subr.bf16.mxu0 0
    %214 = vmatpush1.bf16.msra.mxu0 0
    %215 = vmatprep.subr.bf16.mxu0 0
    %216 = vmatpush1.bf16.msra.mxu0 0
    %217 = vmatprep.subr.bf16.mxu0 0
    %218 = vmatpush1.bf16.msra.mxu0 0
    %219 = vmatprep.subr.bf16.mxu0 0
    %220 = vmatpush1.bf16.msra.mxu0 0
    %221 = vmatprep.subr.bf16.mxu0 0
    %222 = vmatpush1.bf16.msra.mxu0 0
    %223 = vmatprep.mubr.bf16.mxu0 0
    %224 = vmatmul.mubr.bf16.gmra.mrb[0].mxu0 %v138
    %v225 = vpop.f32.mrb[0].mxu0
    %v226 = vadd.f32 %v124, %v225
    %v227 = vpop.f32.mrb[0].mxu0
    %v228 = vpop.f32.mrb[0].mxu0
    %v229 = vpop.f32.mrb[0].mxu0
    %230 = vdwg.mxu0
    %v231 = vtanh.pop %v185
    %v232 = vtanh.pop %v187
    %v233 = vtanh.pop %v226
    %v234 = vpack.c.bf16 %v231, %v231
    %v235 = vpack.c.bf16 %v232, %v232
    %v236 = vld [vmem:[#allocation8] sm:$0xff]
    %v237 = vld [vmem:[#allocation8 + $0x8] sm:$0xff]
    %v238 = vld [vmem:[#allocation8 + $0x10] sm:$0xff]
    %v239 = vld [vmem:[#allocation8 + $0x18] sm:$0xff]
    %v240 = vld [vmem:[#allocation8 + $0x20] sm:$0xff]
    %v241 = vld [vmem:[#allocation8 + $0x28] sm:$0xff]
    %v242 = vld [vmem:[#allocation8 + $0x30] sm:$0xff]
    %v243 = vld [vmem:[#allocation8 + $0x38] sm:$0xff]
    %v244 = vld [vmem:[#allocation8 + $0x40] sm:$0xff]
    %v245 = vld [vmem:[#allocation8 + $0x48] sm:$0xff]
    %v246 = vld [vmem:[#allocation8 + $0x50] sm:$0xff]
    %v247 = vld [vmem:[#allocation8 + $0x58] sm:$0xff]
    %v248 = vld [vmem:[#allocation8 + $0x60] sm:$0xff]
    %v249 = vld [vmem:[#allocation8 + $0x68] sm:$0xff]
    %v250 = vld [vmem:[#allocation8 + $0x70] sm:$0xff]
    %v251 = vld [vmem:[#allocation8 + $0x78] sm:$0xff]
    %v252 = vld [vmem:[#allocation8 + $0x80] sm:$0xff]
    %v253 = vld [vmem:[#allocation8 + $0x88] sm:$0xff]
    %v254 = vld [vmem:[#allocation8 + $0x90] sm:$0xff]
    %v255 = vld [vmem:[#allocation8 + $0x98] sm:$0xff]
    %v256 = vld [vmem:[#allocation8 + $0xa0] sm:$0xff]
    %v257 = vld [vmem:[#allocation8 + $0xa8] sm:$0xff]
    %v258 = vld [vmem:[#allocation8 + $0xb0] sm:$0xff]
    %v259 = vld [vmem:[#allocation8 + $0xb8] sm:$0xff]
    %v260 = vld [vmem:[#allocation8 + $0xc0] sm:$0xff]
    %v261 = vld [vmem:[#allocation8 + $0xc8] sm:$0xff]
    %v262 = vld [vmem:[#allocation8 + $0xd0] sm:$0xff]
    %v263 = vld [vmem:[#allocation8 + $0xd8] sm:$0xff]
    %v264 = vld [vmem:[#allocation8 + $0xe0] sm:$0xff]
    %v265 = vld [vmem:[#allocation8 + $0xe8] sm:$0xff]
    %v266 = vld [vmem:[#allocation8 + $0xf0] sm:$0xff]
    %v267 = vld [vmem:[#allocation8 + $0xf8] sm:$0xff]
    %v268 = vld [vmem:[%s4] sm:$0x3]
    %v270 = vlaneseq
    %v271 = vshrl.u32 %v270, 7
    %v272 = vsub.s32 0, %v271
    %v273 = vrot.slane %v268, %v272
    %v274 = vlaneseq
    %v275 = vshrl.u32 %v274, 7
    %v276 = vsub.s32 1, %v275
    %v277 = vrot.slane %v268, %v276
    %v312 = vunpack.c.l.b16 %v236
    %v313 = vunpack.c.h.b16 %v236
    %v314 = vunpack.c.l.b16 %v237
    %v315 = vunpack.c.h.b16 %v237
    %v316 = vunpack.c.l.b16 %v238
    %v317 = vunpack.c.h.b16 %v238
    %v318 = vunpack.c.l.b16 %v239
    %v319 = vunpack.c.h.b16 %v239
    %v320 = vunpack.c.l.b16 %v240
    %v321 = vunpack.c.h.b16 %v240
    %v322 = vunpack.c.l.b16 %v241
    %v323 = vunpack.c.h.b16 %v241
    %v324 = vunpack.c.l.b16 %v242
    %v325 = vunpack.c.h.b16 %v242
    %v326 = vunpack.c.l.b16 %v243
    %v327 = vunpack.c.h.b16 %v243
    %v328 = vunpack.c.l.b16 %v244
    %v329 = vunpack.c.h.b16 %v244
    %v330 = vunpack.c.l.b16 %v245
    %v331 = vunpack.c.h.b16 %v245
    %v332 = vunpack.c.l.b16 %v246
    %v333 = vunpack.c.h.b16 %v246
    %v334 = vunpack.c.l.b16 %v247
    %v335 = vunpack.c.h.b16 %v247
    %v336 = vunpack.c.l.b16 %v248
    %v337 = vunpack.c.h.b16 %v248
    %v338 = vunpack.c.l.b16 %v249
    %v339 = vunpack.c.h.b16 %v249
    %v340 = vunpack.c.l.b16 %v250
    %v341 = vunpack.c.h.b16 %v250
    %v342 = vunpack.c.l.b16 %v251
    %v343 = vunpack.c.h.b16 %v251
    %v344 = vunpack.c.l.b16 %v252
    %v345 = vunpack.c.h.b16 %v252
    %v346 = vunpack.c.l.b16 %v253
    %v347 = vunpack.c.h.b16 %v253
    %v348 = vunpack.c.l.b16 %v254
    %v349 = vunpack.c.h.b16 %v254
    %v350 = vunpack.c.l.b16 %v255
    %v351 = vunpack.c.h.b16 %v255
    %v352 = vunpack.c.l.b16 %v256
    %v353 = vunpack.c.h.b16 %v256
    %v354 = vunpack.c.l.b16 %v257
    %v355 = vunpack.c.h.b16 %v257
    %v356 = vunpack.c.l.b16 %v258
    %v357 = vunpack.c.h.b16 %v258
    %v358 = vunpack.c.l.b16 %v259
    %v359 = vunpack.c.h.b16 %v259
    %v360 = vunpack.c.l.b16 %v260
    %v361 = vunpack.c.h.b16 %v260
    %v362 = vunpack.c.l.b16 %v261
    %v363 = vunpack.c.h.b16 %v261
    %v364 = vunpack.c.l.b16 %v262
    %v365 = vunpack.c.h.b16 %v262
    %v366 = vunpack.c.l.b16 %v263
    %v367 = vunpack.c.h.b16 %v263
    %v368 = vunpack.c.l.b16 %v264
    %v369 = vunpack.c.h.b16 %v264
    %v370 = vunpack.c.l.b16 %v265
    %v371 = vunpack.c.h.b16 %v265
    %v372 = vunpack.c.l.b16 %v266
    %v373 = vunpack.c.h.b16 %v266
    %v374 = vunpack.c.l.b16 %v267
    %v375 = vunpack.c.h.b16 %v267
    %v376 = vpack.c.b16 %v314, %v312
    %v377 = vpack.c.b16 %v315, %v313
    %v378 = vpack.c.b16 %v318, %v316
    %v379 = vpack.c.b16 %v319, %v317
    %v380 = vpack.c.b16 %v322, %v320
    %v381 = vpack.c.b16 %v323, %v321
    %v382 = vpack.c.b16 %v326, %v324
    %v383 = vpack.c.b16 %v327, %v325
    %v384 = vpack.c.b16 %v330, %v328
    %v385 = vpack.c.b16 %v331, %v329
    %v386 = vpack.c.b16 %v334, %v332
    %v387 = vpack.c.b16 %v335, %v333
    %v388 = vpack.c.b16 %v338, %v336
    %v389 = vpack.c.b16 %v339, %v337
    %v390 = vpack.c.b16 %v342, %v340
    %v391 = vpack.c.b16 %v343, %v341
    %v392 = vpack.c.b16 %v346, %v344
    %v393 = vpack.c.b16 %v347, %v345
    %v394 = vpack.c.b16 %v350, %v348
    %v395 = vpack.c.b16 %v351, %v349
    %v396 = vpack.c.b16 %v354, %v352
    %v397 = vpack.c.b16 %v355, %v353
    %v398 = vpack.c.b16 %v358, %v356
    %v399 = vpack.c.b16 %v359, %v357
    %v400 = vpack.c.b16 %v362, %v360
    %v401 = vpack.c.b16 %v363, %v361
    %v402 = vpack.c.b16 %v366, %v364
    %v403 = vpack.c.b16 %v367, %v365
    %v404 = vpack.c.b16 %v370, %v368
    %v405 = vpack.c.b16 %v371, %v369
    %v406 = vpack.c.b16 %v374, %v372
    %v407 = vpack.c.b16 %v375, %v373
    %440 = vmatprep.subr.bf16.mxu0 %v377
    %441 = vmatpush1.bf16.msra.mxu0 %v376
    %442 = vmatprep.subr.bf16.mxu0 %v379
    %443 = vmatpush1.bf16.msra.mxu0 %v378
    %444 = vmatprep.subr.bf16.mxu0 %v381
    %445 = vmatpush1.bf16.msra.mxu0 %v380
    %446 = vmatprep.subr.bf16.mxu0 %v383
    %447 = vmatpush1.bf16.msra.mxu0 %v382
    %448 = vmatprep.subr.bf16.mxu0 %v385
    %449 = vmatpush1.bf16.msra.mxu0 %v384
    %450 = vmatprep.subr.bf16.mxu0 %v387
    %451 = vmatpush1.bf16.msra.mxu0 %v386
    %452 = vmatprep.subr.bf16.mxu0 %v389
    %453 = vmatpush1.bf16.msra.mxu0 %v388
    %454 = vmatprep.subr.bf16.mxu0 %v391
    %455 = vmatpush1.bf16.msra.mxu0 %v390
    %456 = vmatprep.subr.bf16.mxu0 %v393
    %457 = vmatpush1.bf16.msra.mxu0 %v392
    %458 = vmatprep.subr.bf16.mxu0 %v395
    %459 = vmatpush1.bf16.msra.mxu0 %v394
    %460 = vmatprep.subr.bf16.mxu0 %v397
    %461 = vmatpush1.bf16.msra.mxu0 %v396
    %462 = vmatprep.subr.bf16.mxu0 %v399
    %463 = vmatpush1.bf16.msra.mxu0 %v398
    %464 = vmatprep.subr.bf16.mxu0 %v401
    %465 = vmatpush1.bf16.msra.mxu0 %v400
    %466 = vmatprep.subr.bf16.mxu0 %v403
    %467 = vmatpush1.bf16.msra.mxu0 %v402
    %468 = vmatprep.subr.bf16.mxu0 %v405
    %469 = vmatpush1.bf16.msra.mxu0 %v404
    %470 = vmatprep.subr.bf16.mxu0 %v407
    %471 = vmatpush1.bf16.msra.mxu0 %v406
    %472 = vmatprep.mubr.bf16.mxu0 %v235
    %473 = vmatmul.mubr.bf16.gmra.mrb[0].mxu0 %v234
    %v474 = vpop.f32.mrb[0].mxu0
    %v475 = vadd.f32 %v273, %v474
    %v476 = vpop.f32.mrb[0].mxu0
    %v477 = vadd.f32 %v277, %v476
    %v478 = vpop.f32.mrb[0].mxu0
    %v479 = vpop.f32.mrb[0].mxu0
    %480 = vdwg.mxu0
    %v481 = vtanh.pop %v475
    %v482 = vtanh.pop %v477
    %v483 = vpack.c.bf16 %v481, %v481
    %v484 = vpack.c.bf16 %v482, %v482
    %v485 = vld [vmem:[#allocation9] sm:$0xf]
    %v486 = vld [vmem:[#allocation9 + $0x4] sm:$0xf]
    %v487 = vld [vmem:[#allocation9 + $0x8] sm:$0xf]
    %v488 = vld [vmem:[#allocation9 + $0xc] sm:$0xf]
    %v489 = vld [vmem:[#allocation9 + $0x10] sm:$0xf]
    %v490 = vld [vmem:[#allocation9 + $0x14] sm:$0xf]
    %v491 = vld [vmem:[#allocation9 + $0x18] sm:$0xf]
    %v492 = vld [vmem:[#allocation9 + $0x1c] sm:$0xf]
    %v493 = vld [vmem:[#allocation9 + $0x20] sm:$0xf]
    %v494 = vld [vmem:[#allocation9 + $0x24] sm:$0xf]
    %v495 = vld [vmem:[#allocation9 + $0x28] sm:$0xf]
    %v496 = vld [vmem:[#allocation9 + $0x2c] sm:$0xf]
    %v497 = vld [vmem:[#allocation9 + $0x30] sm:$0xf]
    %v498 = vld [vmem:[#allocation9 + $0x34] sm:$0xf]
    %v499 = vld [vmem:[#allocation9 + $0x38] sm:$0xf]
    %v500 = vld [vmem:[#allocation9 + $0x3c] sm:$0xf]
    %v501 = vld [vmem:[#allocation9 + $0x40] sm:$0xf]
    %v502 = vld [vmem:[#allocation9 + $0x44] sm:$0xf]
    %v503 = vld [vmem:[#allocation9 + $0x48] sm:$0xf]
    %v504 = vld [vmem:[#allocation9 + $0x4c] sm:$0xf]
    %v505 = vld [vmem:[#allocation9 + $0x50] sm:$0xf]
    %v506 = vld [vmem:[#allocation9 + $0x54] sm:$0xf]
    %v507 = vld [vmem:[#allocation9 + $0x58] sm:$0xf]
    %v508 = vld [vmem:[#allocation9 + $0x5c] sm:$0xf]
    %v509 = vld [vmem:[#allocation9 + $0x60] sm:$0xf]
    %v510 = vld [vmem:[#allocation9 + $0x64] sm:$0xf]
    %v511 = vld [vmem:[#allocation9 + $0x68] sm:$0xf]
    %v512 = vld [vmem:[#allocation9 + $0x6c] sm:$0xf]
    %v513 = vld [vmem:[#allocation9 + $0x70] sm:$0xf]
    %v514 = vld [vmem:[#allocation9 + $0x74] sm:$0xf]
    %v515 = vld [vmem:[#allocation9 + $0x78] sm:$0xf]
    %v516 = vld [vmem:[#allocation9 + $0x7c] sm:$0xf]
    %v517 = vld [vmem:[%s6] sm:$0x1]
    %v519 = vlaneseq
    %v520 = vshrl.u32 %v519, 7
    %v521 = vsub.s32 0, %v520
    %v522 = vrot.slane %v517, %v521
    %v556 = vunpack.c.l.b16 %v485
    %v557 = vunpack.c.l.b16 %v486
    %v558 = vunpack.c.l.b16 %v487
    %v559 = vunpack.c.l.b16 %v488
    %v560 = vunpack.c.l.b16 %v489
    %v561 = vunpack.c.l.b16 %v490
    %v562 = vunpack.c.l.b16 %v491
    %v563 = vunpack.c.l.b16 %v492
    %v564 = vunpack.c.l.b16 %v493
    %v565 = vunpack.c.l.b16 %v494
    %v566 = vunpack.c.l.b16 %v495
    %v567 = vunpack.c.l.b16 %v496
    %v568 = vunpack.c.l.b16 %v497
    %v569 = vunpack.c.l.b16 %v498
    %v570 = vunpack.c.l.b16 %v499
    %v571 = vunpack.c.l.b16 %v500
    %v572 = vunpack.c.l.b16 %v501
    %v573 = vunpack.c.l.b16 %v502
    %v574 = vunpack.c.l.b16 %v503
    %v575 = vunpack.c.l.b16 %v504
    %v576 = vunpack.c.l.b16 %v505
    %v577 = vunpack.c.l.b16 %v506
    %v578 = vunpack.c.l.b16 %v507
    %v579 = vunpack.c.l.b16 %v508
    %v580 = vunpack.c.l.b16 %v509
    %v581 = vunpack.c.l.b16 %v510
    %v582 = vunpack.c.l.b16 %v511
    %v583 = vunpack.c.l.b16 %v512
    %v584 = vunpack.c.l.b16 %v513
    %v585 = vunpack.c.l.b16 %v514
    %v586 = vunpack.c.l.b16 %v515
    %v587 = vunpack.c.l.b16 %v516
    %v588 = vpack.c.b16 %v557, %v556
    %v589 = vpack.c.b16 %v559, %v558
    %v590 = vpack.c.b16 %v561, %v560
    %v591 = vpack.c.b16 %v563, %v562
    %v592 = vpack.c.b16 %v565, %v564
    %v593 = vpack.c.b16 %v567, %v566
    %v594 = vpack.c.b16 %v569, %v568
    %v595 = vpack.c.b16 %v571, %v570
    %v596 = vpack.c.b16 %v573, %v572
    %v597 = vpack.c.b16 %v575, %v574
    %v598 = vpack.c.b16 %v577, %v576
    %v599 = vpack.c.b16 %v579, %v578
    %v600 = vpack.c.b16 %v581, %v580
    %v601 = vpack.c.b16 %v583, %v582
    %v602 = vpack.c.b16 %v585, %v584
    %v603 = vpack.c.b16 %v587, %v586
    %620 = vmatprep.subr.bf16.mxu0 0
    %621 = vmatpush1.bf16.msra.mxu0 %v588
    %622 = vmatprep.subr.bf16.mxu0 0
    %623 = vmatpush1.bf16.msra.mxu0 %v589
    %624 = vmatprep.subr.bf16.mxu0 0
    %625 = vmatpush1.bf16.msra.mxu0 %v590
    %626 = vmatprep.subr.bf16.mxu0 0
    %627 = vmatpush1.bf16.msra.mxu0 %v591
    %628 = vmatprep.subr.bf16.mxu0 0
    %629 = vmatpush1.bf16.msra.mxu0 %v592
    %630 = vmatprep.subr.bf16.mxu0 0
    %631 = vmatpush1.bf16.msra.mxu0 %v593
    %632 = vmatprep.subr.bf16.mxu0 0
    %633 = vmatpush1.bf16.msra.mxu0 %v594
    %634 = vmatprep.subr.bf16.mxu0 0
    %635 = vmatpush1.bf16.msra.mxu0 %v595
    %636 = vmatprep.subr.bf16.mxu0 0
    %637 = vmatpush1.bf16.msra.mxu0 %v596
    %638 = vmatprep.subr.bf16.mxu0 0
    %639 = vmatpush1.bf16.msra.mxu0 %v597
    %640 = vmatprep.subr.bf16.mxu0 0
    %641 = vmatpush1.bf16.msra.mxu0 %v598
    %642 = vmatprep.subr.bf16.mxu0 0
    %643 = vmatpush1.bf16.msra.mxu0 %v599
    %644 = vmatprep.subr.bf16.mxu0 0
    %645 = vmatpush1.bf16.msra.mxu0 %v600
    %646 = vmatprep.subr.bf16.mxu0 0
    %647 = vmatpush1.bf16.msra.mxu0 %v601
    %648 = vmatprep.subr.bf16.mxu0 0
    %649 = vmatpush1.bf16.msra.mxu0 %v602
    %650 = vmatprep.subr.bf16.mxu0 0
    %651 = vmatpush1.bf16.msra.mxu0 %v603
    %652 = vmatprep.mubr.bf16.mxu0 %v484
    %653 = vmatmul.mubr.bf16.gmra.mrb[0].mxu0 %v483
    %v654 = vpop.f32.mrb[0].mxu0
    %v655 = vadd.f32 %v522, %v654
    %v656 = vpop.f32.mrb[0].mxu0
    %v657 = vpop.f32.mrb[0].mxu0
    %v658 = vpop.f32.mrb[0].mxu0
    %659 = vdwg.mxu0
    %660 = vmax.xlane.f32.xlu0 %v655
    %v661 = vpop.xlane.xlu0 %660
    %v662 = vsub.f32 %v655, %v661
    %v663 = vmul.f32 %v662, 1.442695
    %v664 = vpow.pop %v663
    %665 = vadd.xlane.f32.xlu0 %v664
    %v666 = vpop.xlane.xlu0 %665
    %v667 = vlog2.pop %v666
    %v668 = vmul.f32 %v667, 0.6931472
    %v669 = vsub.f32 %v662, %v668
    %v670 = vrcp.pop %v666
    %v671 = vmul.f32 %v664, %v670
    %v672 = vlaneseq
    %v673 = vand.u32 %v672, 127
    %674 = vset.pattern.permute.xlu0 8
    %675 = vperm.xlu0 %674, %v108
    %v676 = vpop.permute.xlu0 %675
    %vm677 = vcmp.eq.s32.totalorder %v673, %v676
    %v678 = vsel %vm677, %v669, 0.0
    %679 = vadd.xlane.f32.xlu0 %v678
    %v680 = vpop.xlane.xlu0 %679
    %v681 = vmul.f32 %v671, %v669
    %682 = vadd.xlane.f32.xlu0 %v681
    %v683 = vpop.xlane.xlu0 %682
    %v684 = vsub.f32 0.0, %v683
    %v685 = vpack.c.bf16 %v233, %v233
    %v686 = vld [vmem:[#allocation11] sm:$0xf]
    %v687 = vld [vmem:[#allocation11 + $0x4] sm:$0xf]
    %v688 = vld [vmem:[#allocation11 + $0x8] sm:$0xf]
    %v689 = vld [vmem:[#allocation11 + $0xc] sm:$0xf]
    %v690 = vld [vmem:[#allocation11 + $0x10] sm:$0xf]
    %v691 = vld [vmem:[#allocation11 + $0x14] sm:$0xf]
    %v692 = vld [vmem:[#allocation11 + $0x18] sm:$0xf]
    %v693 = vld [vmem:[#allocation11 + $0x1c] sm:$0xf]
    %v694 = vld [vmem:[#allocation11 + $0x20] sm:$0xf]
    %v695 = vld [vmem:[#allocation11 + $0x24] sm:$0xf]
    %v696 = vld [vmem:[#allocation11 + $0x28] sm:$0xf]
    %v697 = vld [vmem:[#allocation11 + $0x2c] sm:$0xf]
    %v698 = vld [vmem:[#allocation11 + $0x30] sm:$0xf]
    %v699 = vld [vmem:[#allocation11 + $0x34] sm:$0xf]
    %v700 = vld [vmem:[#allocation11 + $0x38] sm:$0xf]
    %v701 = vld [vmem:[#allocation11 + $0x3c] sm:$0xf]
    %v702 = vld [vmem:[%s8] sm:$0x1]
    %v704 = vlaneseq
    %v705 = vshrl.u32 %v704, 7
    %v706 = vsub.s32 0, %v705
    %v707 = vrot.slane %v702, %v706
    %v725 = vunpack.c.l.b16 %v686
    %v726 = vunpack.c.l.b16 %v687
    %v727 = vunpack.c.l.b16 %v688
    %v728 = vunpack.c.l.b16 %v689
    %v729 = vunpack.c.l.b16 %v690
    %v730 = vunpack.c.l.b16 %v691
    %v731 = vunpack.c.l.b16 %v692
    %v732 = vunpack.c.l.b16 %v693
    %v733 = vunpack.c.l.b16 %v694
    %v734 = vunpack.c.l.b16 %v695
    %v735 = vunpack.c.l.b16 %v696
    %v736 = vunpack.c.l.b16 %v697
    %v737 = vunpack.c.l.b16 %v698
    %v738 = vunpack.c.l.b16 %v699
    %v739 = vunpack.c.l.b16 %v700
    %v740 = vunpack.c.l.b16 %v701
    %v741 = vpack.c.b16 %v726, %v725
    %v742 = vpack.c.b16 %v728, %v727
    %v743 = vpack.c.b16 %v730, %v729
    %v744 = vpack.c.b16 %v732, %v731
    %v745 = vpack.c.b16 %v734, %v733
    %v746 = vpack.c.b16 %v736, %v735
    %v747 = vpack.c.b16 %v738, %v737
    %v748 = vpack.c.b16 %v740, %v739
    %757 = vmatprep.subr.bf16.mxu0 0
    %758 = vmatpush1.bf16.msra.mxu0 %v741
    %759 = vmatprep.subr.bf16.mxu0 0
    %760 = vmatpush1.bf16.msra.mxu0 %v742
    %761 = vmatprep.subr.bf16.mxu0 0
    %762 = vmatpush1.bf16.msra.mxu0 %v743
    %763 = vmatprep.subr.bf16.mxu0 0
    %764 = vmatpush1.bf16.msra.mxu0 %v744
    %765 = vmatprep.subr.bf16.mxu0 0
    %766 = vmatpush1.bf16.msra.mxu0 %v745
    %767 = vmatprep.subr.bf16.mxu0 0
    %768 = vmatpush1.bf16.msra.mxu0 %v746
    %769 = vmatprep.subr.bf16.mxu0 0
    %770 = vmatpush1.bf16.msra.mxu0 %v747
    %771 = vmatprep.subr.bf16.mxu0 0
    %772 = vmatpush1.bf16.msra.mxu0 %v748
    %773 = vmatprep.subr.bf16.mxu0 0
    %774 = vmatpush1.bf16.msra.mxu0 0
    %775 = vmatprep.subr.bf16.mxu0 0
    %776 = vmatpush1.bf16.msra.mxu0 0
    %777 = vmatprep.subr.bf16.mxu0 0
    %778 = vmatpush1.bf16.msra.mxu0 0
    %779 = vmatprep.subr.bf16.mxu0 0
    %780 = vmatpush1.bf16.msra.mxu0 0
    %781 = vmatprep.subr.bf16.mxu0 0
    %782 = vmatpush1.bf16.msra.mxu0 0
    %783 = vmatprep.subr.bf16.mxu0 0
    %784 = vmatpush1.bf16.msra.mxu0 0
    %785 = vmatprep.subr.bf16.mxu0 0
    %786 = vmatpush1.bf16.msra.mxu0 0
    %787 = vmatprep.subr.bf16.mxu0 0
    %788 = vmatpush1.bf16.msra.mxu0 0
    %789 = vmatprep.mubr.bf16.mxu0 0
    %790 = vmatmul.mubr.bf16.gmra.mrb[0].mxu0 %v685
    %v791 = vpop.f32.mrb[0].mxu0
    %v792 = vadd.f32 %v707, %v791
    %v793 = vpop.f32.mrb[0].mxu0
    %v794 = vpop.f32.mrb[0].mxu0
    %v795 = vpop.f32.mrb[0].mxu0
    %796 = vdwg.mxu0
    %v797 = vtanh.pop %v792
    %v798 = vld [vmem:[%s9] sm:$0x1]
    %v800 = vlaneseq
    %v801 = vshrl.u32 %v800, 7
    %v802 = vsub.s32 0, %v801
    %v803 = vrot.slane %v798, %v802
    %v805 = vmul.f32 %v797, %v803
    %806 = vadd.xlane.f32.xlu0 %v805
    %v807 = vpop.xlane.xlu0 %806
    %v808 = vld [vmem:[#allocation2] sm:$0x1]
    %v810 = vlaneseq
    %v811 = vshrl.u32 %v810, 7
    %v812 = vsub.s32 0, %v811
    %v813 = vrot.slane %v808, %v812
    %v815 = vadd.f32 %v807, %v813
    %vm816 = vcmp.eq.s32.totalorder %v673, 16
    %v817 = vsel %vm816, %v680, %v669
    %vm818 = vcmp.eq.s32.totalorder %v673, 17
    %v819 = vsel %vm818, %v684, %v817
    %vm820 = vcmp.eq.s32.totalorder %v673, 18
    %822 = vset.pattern.permute.xlu0 0
    %823 = vperm.xlu0 %822, %v815
    %v824 = vpop.permute.xlu0 %823
    %v826 = vsel %vm820, %v824, %v819
    %827 = vst [vmem:[#allocation12] sm:$0xff] %v826
    // Predicated region
    $region66: #{tpu_custom_call.1} parent=1 // pred_check
      _
    $region67: #{tpu_custom_call.1} parent=1 // pred_check_branch
      %829 = sbr.rel (0) target = $region69
    $region68: #{tpu_custom_call.1} parent=1 // pred_region
      %s831 = ssub.s32 128, 128
      %832 = vsyncadd [#allocation5], %s831
      %s834 = sshll.u32 [#allocation12], 4
      %s835 = int_to_ptr.vmem [resolvable:$true] %s834
      %837 = dma.vmem_to_hbm [thread:$0]  %s835, 128, %s11, [#allocation5]
    $region69: #{tpu_custom_call.1} parent=1 // pred_fallthru
      _
    // Predicated region
    $region70: #{tpu_custom_call.1} parent=1 // pred_check
      _
    $region71: #{tpu_custom_call.1} parent=1 // pred_check_branch
      %839 = sbr.rel (0) target = $region73
    $region72: #{tpu_custom_call.1} parent=1 // pred_region
      %840 = dma.done [#allocation5], 128
    $region73: #{tpu_custom_call.1} parent=1 // pred_fallthru
      _
    %841 = vsyncpa [#allocation4], 1
    %842 = vsyncpa [#allocation7], 1
    %843 = vsyncpa [#allocation10], 1
    %844 = vsyncpa [#allocation5], 1

</llo_original>
